<compile_context>
chip_gen: v7x
topology: tpu7x:2x2x1
jax: 0.10.0
libtpu: 0.0.40
codegen_flags: <defaults>
</compile_context>

<pallas_src>
import jax
import jax.numpy as jnp
from jax.experimental import pallas as pl
from jax.experimental.pallas import tpu as pltpu


def _uncertainty_loss_kernel(packed_ref, out_ref):
    # packed layout (1, 4): [loss_seg, loss_cls, log_var_seg, log_var_cls]
    packed = packed_ref[...]                      # single vld of the tiny tile
    losses = packed[:, 0:2]                       # (1, 2)
    log_vars = packed[:, 2:4]                     # (1, 2)
    weights = jnp.exp(-log_vars)                  # one vectorized EUP push
    # exp(-lv)*loss + lv, summed over the two tasks -> (1, 1)
    out_ref[...] = jnp.sum(weights * losses + log_vars, axis=-1, keepdims=True)


def uncertainty_weighted_loss(loss_seg, loss_cls, log_var_seg, log_var_cls):
    """Pallas TPU implementation of UncertaintyWeightedLoss.forward.

    All arguments are scalars (0-d arrays / Python floats). Returns a 0-d
    float32 array matching the PyTorch semantics.
    """
    f32 = jnp.float32
    packed = jnp.stack([
        jnp.asarray(loss_seg, f32),
        jnp.asarray(loss_cls, f32),
        jnp.asarray(log_var_seg, f32),
        jnp.asarray(log_var_cls, f32),
    ]).reshape(1, 4)

    out = pl.pallas_call(
        _uncertainty_loss_kernel,
        out_shape=jax.ShapeDtypeStruct((1, 1), f32),
        # Whole-array blocks (grid = ()): one input DMA, one output DMA.
        in_specs=[pl.BlockSpec(memory_space=pltpu.VMEM)],
        out_specs=pl.BlockSpec(memory_space=pltpu.VMEM),
    )(packed)
    return out[0, 0]  # 0-d scalar, like the torch module


class UncertaintyWeightedLossPallas:
    """Mirrors the nn.Module: holds log_var_seg / log_var_cls parameters."""

    def __init__(self):
        # Deterministic init, identical to nn.Parameter(torch.tensor(0.0)).
        self.log_var_seg = jnp.float32(0.0)
        self.log_var_cls = jnp.float32(0.0)

    def __call__(self, loss_seg, loss_cls):
        return uncertainty_weighted_loss(
            loss_seg, loss_cls, self.log_var_seg, self.log_var_cls)


if __name__ == "__main__":
    key = jax.random.PRNGKey(0)
    k1, k2 = jax.random.split(key)
    # Synthetic per-task losses (scalars, as produced by e.g. CE losses).
    loss_seg = jax.random.uniform(k1, (), dtype=jnp.float32) * 2.0
    loss_cls = jax.random.uniform(k2, (), dtype=jnp.float32) * 2.0

    module = UncertaintyWeightedLossPallas()
    total = module(loss_seg, loss_cls)
    total = jax.block_until_ready(total)

    # Reference check in plain JAX.
    ref = (jnp.exp(-module.log_var_seg) * loss_seg + module.log_var_seg
           + jnp.exp(-module.log_var_cls) * loss_cls + module.log_var_cls)
    assert jnp.allclose(total, ref, rtol=1e-6, atol=1e-6), (total, ref)

    print("KERNEL_OK")
</pallas_src>

<mosaic_0001>
module attributes {stable_mosaic.version = 11 : i64} {
  func.func @_uncertainty_loss_kernel(%arg0: memref<1x4xf32, #tpu.memory_space<vmem>>, %arg1: memref<1x1xf32, #tpu.memory_space<vmem>>) attributes {dimension_semantics = [], scalar_prefetch = 0 : i64, scratch_operands = 0 : i64, tpu.core_type = #tpu.core_type<tc>} {
    %c0 = arith.constant 0 : index
    %c0_0 = arith.constant 0 : index
    %0 = vector.load %arg0[%c0, %c0_0] : memref<1x4xf32, #tpu.memory_space<vmem>>, vector<1x4xf32>
    %1 = vector.extract_strided_slice %0 {offsets = [0, 0], sizes = [1, 2], strides = [1, 1]} : vector<1x4xf32> to vector<1x2xf32>
    %2 = vector.extract_strided_slice %0 {offsets = [0, 2], sizes = [1, 2], strides = [1, 1]} : vector<1x4xf32> to vector<1x2xf32>
    %cst = arith.constant 0.000000e+00 : f32
    %3 = vector.broadcast %cst : f32 to vector<1x2xf32>
    %4 = arith.subf %3, %2 : vector<1x2xf32>
    %5 = math.exp %4 : vector<1x2xf32>
    %6 = arith.mulf %5, %1 : vector<1x2xf32>
    %7 = arith.addf %6, %2 : vector<1x2xf32>
    %cst_1 = arith.constant dense<0.000000e+00> : vector<1xf32>
    %8 = vector.multi_reduction <add>, %7, %cst_1 [1] : vector<1x2xf32> to vector<1xf32>
    %9 = vector.shape_cast %8 : vector<1xf32> to vector<1x1xf32>
    %c0_2 = arith.constant 0 : index
    %c0_3 = arith.constant 0 : index
    %10 = vector.load %arg1[%c0_2, %c0_3] : memref<1x1xf32, #tpu.memory_space<vmem>>, vector<1x1xf32>
    tpu.vector_store %arg1[%c0_2, %c0_3], %9 {strides = array<i32>} : memref<1x1xf32, #tpu.memory_space<vmem>>, vector<1x1xf32>,
    return
  }
}

</mosaic_0001>

<llo_original>
// kernel: tpu_custom_call.1
$region0: #{tpu_custom_call.1}
  #allocation0 [shape = 'u32[]', space=smem, size = 0x4, offset = 0x4, fixed_abs, tag = 'smem constant byte address 0x4 - core index']
  #allocation1 [shape = 'u32[144,128]{1,0:T(1,128)}', space=vmem, size = 0x12000, scoped, tag = 'internal scratch']
  %s0 = inlined_call_operand.hbm [shape: f32[1,4], index: 0, kind: input, shape index: {}]
  %s1 = inlined_call_operand.hbm [shape: f32[1,1], index: 1, kind: output, shape index: {}]
  %s2 = sld [smem:[#allocation0]]
  $region18: #{tpu_custom_call.1} parent=0
    _
  %s4 = ssub.s32 1, %s2
  %s5 = scalar_select 0, %s4, %s2
  $region1: #{tpu_custom_call.1} parent=0
    #allocation2 [shape = 'u8[512]{0}', space=vmem, size = 0x400, scoped, tag = 'input window, operand 0, single buffered']
    #allocation3 [shape = 's32[1]{0}', space=sflag, size = 0x4, scoped, tag = 'scoped memory for tpu_custom_call.1']
    #allocation4 [shape = 's32[1]{0}', space=sflag, size = 0x4, scoped, tag = 'scoped memory for tpu_custom_call.1']
    #allocation5 [shape = 'u8[512]{0}', space=vmem, size = 0x400, scoped, tag = 'output window, operand 0, single buffered']
    %6 = vsyncpa [#allocation3], 0
    %7 = vsyncpa [#allocation4], 0
    // Predicated region
    $region2: #{tpu_custom_call.1} parent=1 // pred_check
      _
    $region3: #{tpu_custom_call.1} parent=1 // pred_check_branch
      %9 = sbr.rel (0) target = $region5
    $region4: #{tpu_custom_call.1} parent=1 // pred_region
      %s11 = ssub.s32 16, 16
      %12 = vsyncadd [#allocation3], %s11
      %s14 = sshll.u32 [#allocation2], 4
      %s15 = int_to_ptr.vmem [resolvable:$true] %s14
      %17 = dma.hbm_to_vmem [thread:$0]  %s0, 16, %s15, [#allocation3]
    $region5: #{tpu_custom_call.1} parent=1 // pred_fallthru
      _
    // Predicated region
    $region6: #{tpu_custom_call.1} parent=1 // pred_check
      _
    $region7: #{tpu_custom_call.1} parent=1 // pred_check_branch
      %19 = sbr.rel (0) target = $region9
    $region8: #{tpu_custom_call.1} parent=1 // pred_region
      %20 = dma.done [#allocation3], 16
    $region9: #{tpu_custom_call.1} parent=1 // pred_fallthru
      _
    %v21 = vld [vmem:[#allocation2] sm:$0x1]
    %v22 = vsub.f32 0.0, %v21
    %v23 = vmul.f32 %v22, 1.442695
    %v24 = vpow.pop %v23
    %26 = vrot.lane.b32.xlu0 %v21, 2
    %v27 = vpop.permute.xlu0 %26
    %v29 = vmul.f32 %v24, %v27
    %v30 = vadd.f32 %v29, %v21
    %v32 = vlaneseq
    %v33 = vshrl.u32 %v32, 7
    %v34 = vsub.s32 0, %v33
    %v35 = vrot.slane %v30, %v34
    %36 = vrot.lane.b32.xlu0 %v35, 126
    %v37 = vpop.permute.xlu0 %36
    %vm39 = vcmask 8192
    %v40 = vsel %vm39, %v37, 0.0
    %41 = vadd.xlane.f32.xlu0 %v40
    %v42 = vpop.xlane.xlu0 %41
    %vm43 = vcmask 0
    %44 = vst.msk [vmem:[#allocation5] sm:$0x1] %vm43, %v42
    // Predicated region
    $region10: #{tpu_custom_call.1} parent=1 // pred_check
      _
    $region11: #{tpu_custom_call.1} parent=1 // pred_check_branch
      %46 = sbr.rel (0) target = $region13
    $region12: #{tpu_custom_call.1} parent=1 // pred_region
      %s48 = ssub.s32 16, 16
      %49 = vsyncadd [#allocation4], %s48
      %s51 = sshll.u32 [#allocation5], 4
      %s52 = int_to_ptr.vmem [resolvable:$true] %s51
      %54 = dma.vmem_to_hbm [thread:$0]  %s52, 16, %s1, [#allocation4]
    $region13: #{tpu_custom_call.1} parent=1 // pred_fallthru
      _
    // Predicated region
    $region14: #{tpu_custom_call.1} parent=1 // pred_check
      _
    $region15: #{tpu_custom_call.1} parent=1 // pred_check_branch
      %56 = sbr.rel (0) target = $region17
    $region16: #{tpu_custom_call.1} parent=1 // pred_region
      %57 = dma.done [#allocation4], 16
    $region17: #{tpu_custom_call.1} parent=1 // pred_fallthru
      _
    %58 = vsyncpa [#allocation3], 1
    %59 = vsyncpa [#allocation4], 1

</llo_original>
